<compile_context>
chip_gen: v7x
topology: tpu7x:2x2x1
jax: 0.10.0
libtpu: 0.0.40
codegen_flags: <defaults>
</compile_context>

<pallas_src>
import functools

import jax
import jax.numpy as jnp
import numpy as np
from jax.experimental import pallas as pl
from jax.experimental.pallas import tpu as pltpu


def gradient_flow_kernel(factor_ref, x_ref, w1_ref, w1t_ref, b1_ref, v_ref,
                         dy_ref, *, matmul_dtype):
    """One batch tile: dy = -factor * grad_x E(x).

    Shapes per grid step:
      factor_ref : (1,)    f32  SMEM scalar
      x_ref      : (TB, D) f32  VMEM (pipelined over batch)
      w1_ref     : (D, H)  f32  VMEM (resident across grid)
      w1t_ref    : (H, D)  f32  VMEM (resident, pre-transposed in wrapper)
      b1_ref     : (1, H)  f32  VMEM (resident)
      v_ref      : (1, H)  f32  VMEM (resident)
      dy_ref     : (TB, D) f32  VMEM
    """
    x = x_ref[...]
    neg_factor = -factor_ref[0]

    # h = tanh(x @ W1 + b1)                               (MXU + EUP)
    h = jnp.tanh(
        jnp.dot(
            x.astype(matmul_dtype),
            w1_ref[...].astype(matmul_dtype),
            preferred_element_type=jnp.float32,
        )
        + b1_ref[...]
    )

    # u = (1 - h^2) * (-factor * v): fold the scalar into the tiny (1,H) scale
    # instead of a (TB,D) multiply on the output.                       (VPU)
    u = (1.0 - h * h) * (neg_factor * v_ref[...])

    # dy = u @ W1^T as a plain (M,K)x(K,N) matmul against the resident,
    # pre-transposed W1^T — native MXU push, no in-kernel transpose.    (MXU)
    dy_ref[...] = jnp.dot(
        u.astype(matmul_dtype),
        w1t_ref[...].astype(matmul_dtype),
        preferred_element_type=jnp.float32,
    )


def _pick_tb(B, max_rows=512):
    """Largest multiple-of-8 batch tile dividing B, capped at max_rows,
    preferring >= 2 grid steps so v7x's two TensorCores both get work."""
    candidates = [t for t in range(8, min(B, max_rows) + 1, 8) if B % t == 0]
    if not candidates:
        return B                       # tiny / awkward batch: single tile
    two_step = [t for t in candidates if B // t >= 2]
    return max(two_step) if two_step else max(candidates)


def gradient_flow(t, x, params, factor=1.0, *, tb=None,
                  matmul_dtype=jnp.float32):
    """Pallas wrapper reproducing GradientFlow.forward(t, x).

    `t` is accepted (ODE-solver signature) but unused, exactly like the module.
    Returns dy with the same shape as x.

    matmul_dtype=jnp.bfloat16 is the recommended setting on v5e/v6e/v7x once
    D, H reach production sizes (>=128); elementwise math stays f32 either way.
    """
    del t  # unused by GradientFlow.forward
    w1, b1, v = params
    B, D = x.shape
    _, H = w1.shape

    if tb is None:
        tb = _pick_tb(B)
    assert B % tb == 0, "batch tile must divide B (pad the batch otherwise)"

    # One-time host/XLA-side transpose so the second contraction is a plain
    # (TB,H) x (H,D) matmul inside the kernel.
    w1t = jnp.transpose(w1)

    # 1-D SMEM scalar (2-D SMEM would pad to an [8,128]-word tile).
    factor_arr = jnp.full((1,), factor, dtype=jnp.float32)

    grid = (B // tb,)
    kernel = functools.partial(gradient_flow_kernel, matmul_dtype=matmul_dtype)

    return pl.pallas_call(
        kernel,
        out_shape=jax.ShapeDtypeStruct((B, D), jnp.float32),
        grid=grid,
        in_specs=[
            pl.BlockSpec(memory_space=pltpu.MemorySpace.SMEM),   # factor (scalar path)
            pl.BlockSpec((tb, D), lambda i: (i, 0)),             # x  (pipelined over batch)
            pl.BlockSpec((D, H), lambda i: (0, 0)),              # W1   (VMEM-resident)
            pl.BlockSpec((H, D), lambda i: (0, 0)),              # W1^T (VMEM-resident)
            pl.BlockSpec((1, H), lambda i: (0, 0)),              # b1   (resident)
            pl.BlockSpec((1, H), lambda i: (0, 0)),              # v    (resident)
        ],
        out_specs=pl.BlockSpec((tb, D), lambda i: (i, 0)),       # dy
        compiler_params=pltpu.CompilerParams(
            # Batch axis is embarrassingly parallel -> shards across the two
            # TensorCores on v7x; no-op on v5e/v6e.
            dimension_semantics=("parallel",),
            # Explicit scoped-VMEM budget: covers v5e's 16 MiB default while
            # staying well under v7x's 64 MiB physical VMEM.  Raise toward
            # 64-96 MiB on v5e/v6e only when TB is grown for production D,H.
            vmem_limit_bytes=32 * 1024 * 1024,
        ),
        cost_estimate=pl.CostEstimate(
            flops=4 * B * D * H,            # two (B,D)x(D,H)-sized contractions
            transcendentals=B * H,          # tanh
            bytes_accessed=4 * (2 * B * D + 2 * D * H + 2 * H + 1),
        ),
    )(factor_arr, x, w1, w1t, b1, v)


def _reference(t, x, params, factor):
    """Pure-JAX reference: autograd of the energy, mirroring torch.autograd."""
    del t
    w1, b1, v = params

    def total_energy(xx):
        return jnp.sum(jnp.tanh(xx @ w1 + b1) * v)

    g = jax.grad(total_energy)(x)   # per-sample energies are independent
    return -factor * g


if __name__ == "__main__":
    key = jax.random.PRNGKey(0)
    kx, k1, k2, k3 = jax.random.split(key, 4)

    B, D, H = 64, 16, 32   # batch, state dim, energy-net hidden dim

    x = jax.random.normal(kx, (B, D), dtype=jnp.float32)
    w1 = jax.random.normal(k1, (D, H), dtype=jnp.float32) * 0.1
    b1 = jax.random.normal(k2, (1, H), dtype=jnp.float32) * 0.1
    v = jax.random.normal(k3, (1, H), dtype=jnp.float32) * 0.1
    params = (w1, b1, v)

    t = 0.0          # unused by GradientFlow.forward
    factor = 1.5

    # Auto-picked tile: tb=32 -> grid=(2,), i.e. one step per v7x TensorCore.
    dy = gradient_flow(t, x, params, factor)
    jax.block_until_ready(dy)

    dy_ref = _reference(t, x, params, factor)
    np.testing.assert_allclose(np.asarray(dy), np.asarray(dy_ref),
                               rtol=1e-5, atol=1e-5)

    print("KERNEL_OK")
</pallas_src>

<mosaic_0001>
module attributes {stable_mosaic.version = 11 : i64} {
  func.func @gradient_flow_kernel(%arg0: i32, %arg1: memref<1xf32, #tpu.memory_space<smem>>, %arg2: memref<32x16xf32, #tpu.memory_space<vmem>>, %arg3: memref<16x32xf32, #tpu.memory_space<vmem>>, %arg4: memref<32x16xf32, #tpu.memory_space<vmem>>, %arg5: memref<1x32xf32, #tpu.memory_space<vmem>>, %arg6: memref<1x32xf32, #tpu.memory_space<vmem>>, %arg7: memref<32x16xf32, #tpu.memory_space<vmem>>) attributes {dimension_semantics = [#tpu.dimension_semantics<parallel>], iteration_bounds = array<i64: 2>, scalar_prefetch = 0 : i64, scratch_operands = 0 : i64, tpu.core_type = #tpu.core_type<tc>, window_params = [{transform_indices = @transform_0, window_bounds = array<i64: 1>}, {transform_indices = @transform_1, window_bounds = array<i64: 32, 16>}, {pipeline_mode = #tpu.pipeline_mode<synchronous>, transform_indices = @transform_2, window_bounds = array<i64: 16, 32>}, {pipeline_mode = #tpu.pipeline_mode<synchronous>, transform_indices = @transform_3, window_bounds = array<i64: 32, 16>}, {pipeline_mode = #tpu.pipeline_mode<synchronous>, transform_indices = @transform_4, window_bounds = array<i64: 1, 32>}, {pipeline_mode = #tpu.pipeline_mode<synchronous>, transform_indices = @transform_5, window_bounds = array<i64: 1, 32>}, {transform_indices = @transform_6, window_bounds = array<i64: 32, 16>}]} {
    %c0 = arith.constant 0 : index
    %c0_0 = arith.constant 0 : index
    %0 = vector.load %arg2[%c0, %c0_0] : memref<32x16xf32, #tpu.memory_space<vmem>>, vector<32x16xf32>
    %c0_1 = arith.constant 0 : index
    %1 = memref.load %arg1[%c0_1] : memref<1xf32, #tpu.memory_space<smem>>
    %cst = arith.constant 0.000000e+00 : f32
    %2 = arith.subf %cst, %1 : f32
    %c0_2 = arith.constant 0 : index
    %c0_3 = arith.constant 0 : index
    %3 = vector.load %arg3[%c0_2, %c0_3] : memref<16x32xf32, #tpu.memory_space<vmem>>, vector<16x32xf32>
    %cst_4 = arith.constant dense<0.000000e+00> : vector<32x32xf32>
    %4 = tpu.matmul %0, %3, %cst_4 {dimension_numbers = #tpu.dot_dimension_numbers<[1], [0], [0], [1], [0, 0, 1, 1], [], []>} : vector<32x16xf32>, vector<16x32xf32>, vector<32x32xf32> -> vector<32x32xf32>
    %c0_5 = arith.constant 0 : index
    %c0_6 = arith.constant 0 : index
    %5 = vector.load %arg5[%c0_5, %c0_6] : memref<1x32xf32, #tpu.memory_space<vmem>>, vector<1x32xf32>
    %6 = vector.broadcast %5 : vector<1x32xf32> to vector<32x32xf32>
    %7 = arith.addf %4, %6 : vector<32x32xf32>
    %8 = math.tanh %7 : vector<32x32xf32>
    %9 = arith.mulf %8, %8 : vector<32x32xf32>
    %cst_7 = arith.constant 1.000000e+00 : f32
    %10 = vector.broadcast %cst_7 : f32 to vector<32x32xf32>
    %11 = arith.subf %10, %9 : vector<32x32xf32>
    %c0_8 = arith.constant 0 : index
    %c0_9 = arith.constant 0 : index
    %12 = vector.load %arg6[%c0_8, %c0_9] : memref<1x32xf32, #tpu.memory_space<vmem>>, vector<1x32xf32>
    %13 = vector.broadcast %2 : f32 to vector<1x32xf32>
    %14 = arith.mulf %13, %12 : vector<1x32xf32>
    %15 = vector.broadcast %14 : vector<1x32xf32> to vector<32x32xf32>
    %16 = arith.mulf %11, %15 : vector<32x32xf32>
    %c0_10 = arith.constant 0 : index
    %c0_11 = arith.constant 0 : index
    %17 = vector.load %arg4[%c0_10, %c0_11] : memref<32x16xf32, #tpu.memory_space<vmem>>, vector<32x16xf32>
    %cst_12 = arith.constant dense<0.000000e+00> : vector<32x16xf32>
    %18 = tpu.matmul %16, %17, %cst_12 {dimension_numbers = #tpu.dot_dimension_numbers<[1], [0], [0], [1], [0, 0, 1, 1], [], []>} : vector<32x32xf32>, vector<32x16xf32>, vector<32x16xf32> -> vector<32x16xf32>
    %c0_13 = arith.constant 0 : index
    %c0_14 = arith.constant 0 : index
    %19 = vector.load %arg7[%c0_13, %c0_14] : memref<32x16xf32, #tpu.memory_space<vmem>>, vector<32x16xf32>
    tpu.vector_store %arg7[%c0_13, %c0_14], %18 {strides = array<i32>} : memref<32x16xf32, #tpu.memory_space<vmem>>, vector<32x16xf32>,
    return
  }
  func.func @transform_0(%arg0: i32) -> i32 {
    %c0_i32 = arith.constant 0 : i32
    %c0_i32_0 = arith.constant 0 : i32
    return %c0_i32 : i32
  }
  func.func @transform_1(%arg0: i32) -> (i32, i32) {
    %c0_i32 = arith.constant 0 : i32
    %c0_i32_0 = arith.constant 0 : i32
    return %arg0, %c0_i32 : i32, i32
  }
  func.func @transform_2(%arg0: i32) -> (i32, i32) {
    %c0_i32 = arith.constant 0 : i32
    %c0_i32_0 = arith.constant 0 : i32
    %c0_i32_1 = arith.constant 0 : i32
    return %c0_i32, %c0_i32_0 : i32, i32
  }
  func.func @transform_3(%arg0: i32) -> (i32, i32) {
    %c0_i32 = arith.constant 0 : i32
    %c0_i32_0 = arith.constant 0 : i32
    %c0_i32_1 = arith.constant 0 : i32
    return %c0_i32, %c0_i32_0 : i32, i32
  }
  func.func @transform_4(%arg0: i32) -> (i32, i32) {
    %c0_i32 = arith.constant 0 : i32
    %c0_i32_0 = arith.constant 0 : i32
    %c0_i32_1 = arith.constant 0 : i32
    return %c0_i32, %c0_i32_0 : i32, i32
  }
  func.func @transform_5(%arg0: i32) -> (i32, i32) {
    %c0_i32 = arith.constant 0 : i32
    %c0_i32_0 = arith.constant 0 : i32
    %c0_i32_1 = arith.constant 0 : i32
    return %c0_i32, %c0_i32_0 : i32, i32
  }
  func.func @transform_6(%arg0: i32) -> (i32, i32) {
    %c0_i32 = arith.constant 0 : i32
    %c0_i32_0 = arith.constant 0 : i32
    return %arg0, %c0_i32 : i32, i32
  }
}

</mosaic_0001>

<llo_original>
// kernel: tpu_custom_call.1
$region0: #{tpu_custom_call.1}
  #allocation0 [shape = 'u32[]', space=smem, size = 0x4, offset = 0x4, fixed_abs, tag = 'smem constant byte address 0x4 - core index']
  #allocation1 [shape = 'u32[144,128]{1,0:T(1,128)}', space=vmem, size = 0x12000, scoped, tag = 'internal scratch']
  #allocation2 [shape = 'f32[1]{0:T(128)S(6)}', space=smem, size = 0x200, scoped, tag = 'scoped memory for tpu_custom_call.1']
  %s0 = inlined_call_operand.<no memory space> [shape: f32[1], index: 0, kind: input, shape index: {}]
  %s1 = inlined_call_operand.vmem [shape: f32[64,16], index: 1, kind: input, shape index: {}]
  %s2 = inlined_call_operand.vmem [shape: f32[16,32], index: 2, kind: input, shape index: {}]
  %s3 = inlined_call_operand.vmem [shape: f32[32,16], index: 3, kind: input, shape index: {}]
  %s4 = inlined_call_operand.vmem [shape: f32[1,32], index: 4, kind: input, shape index: {}]
  %s5 = inlined_call_operand.vmem [shape: f32[1,32], index: 5, kind: input, shape index: {}]
  %s6 = inlined_call_operand.vmem [shape: f32[64,16], index: 6, kind: output, shape index: {}]
  %s7 = sld [smem:[#allocation0]]
  $region57: #{tpu_custom_call.1} parent=0
    _
  %s9 = ssub.s32 1, %s7
  %s10 = scalar_select 0, %s9, %s7
  %11 = sst [smem:[#allocation2]] %s0
  loop: start=0, step=1, limit=4
  $region2: #{tpu_custom_call.1} parent=0 // loop_pre_header
    _
  $region3: #{tpu_custom_call.1} parent=0 // loop_header
    %s13 = sphi 0, %s17
    %p14 = scmp.ge.s32.totalorder %s13, 4
    %s21 = sphi 0, %s21
    %s23 = sphi 0, %s21
    %s24 = sphi 0, %s23
    %s38 = sphi 0, %s24
    %s44 = sphi 0, %s46
    %s47 = sphi 0, %s44
    %s48 = sphi 0, %s47
    %s64 = sphi 0, %s48
    %s68 = sphi 0, %s68
    %s70 = sphi 0, %s68
    %s71 = sphi 0, %s70
    %s85 = sphi 0, %s71
    %s89 = sphi 0, %s89
    %s91 = sphi 0, %s89
    %s92 = sphi 0, %s91
    %s106 = sphi 0, %s92
    %s110 = sphi 0, %s110
    %s112 = sphi 0, %s110
    %s113 = sphi 0, %s112
    %s127 = sphi 0, %s113
    %s131 = sphi 0, %s131
    %s133 = sphi 0, %s131
    %s134 = sphi 0, %s133
    %s148 = sphi 0, %s134
    %s154 = sphi 0, %s156
    %s157 = sphi 0, %s154
    %s158 = sphi 0, %s157
    %s174 = sphi 0, %s158
  $region4: #{tpu_custom_call.1} parent=0 // loop_header_branch
    %16 = sbr.rel (%p14) target = $region8
  $region5: #{tpu_custom_call.1} parent=0 // loop_body
    %s18 = ssub.s32 %s13, 1
    %s19 = ssub.s32 %s13, 2
    %s20 = sadd.s32 %s13, 1
    %s22 = sadd.s32 %s21, 1
    %p25 = scmp.eq.s32.totalorder %s13, 1
    %p26 = scmp.ne.s32.totalorder %s21, %s23
    %p27 = scmp.eq.s32.totalorder %s13, 0
    %p28 = por %p26, %p27
    %p29 = scmp.ne.s32.totalorder %s21, %s23
    %p30 = scmp.eq.s32.totalorder %s18, 1
    %p31 = por %p29, %p30
    %p32 = scmp.ne.s32.totalorder %s23, %s24
    %p33 = scmp.eq.s32.totalorder %s18, 0
    %p34 = por %p32, %p33
    %p35 = scmp.ne.s32.totalorder %s23, %s24
    %p36 = scmp.eq.s32.totalorder %s19, 1
    %p37 = por %p35, %p36
    %p39 = scmp.ne.s32.totalorder %s24, %s38
    %p40 = scmp.eq.s32.totalorder %s19, 0
    %p41 = por %p39, %p40
    %s42 = ssub.s32 %s13, %s20
    %p43 = scmp.eq.s32.totalorder %s42, 0
    %s45 = sadd.s32 %s44, 1
    %s46 = scalar_select %p43, %s44, %s45
    %p49 = pneg %p43
    %p50 = scmp.eq.s32.totalorder %s13, 1
    %p51 = por %p49, %p50
    %p52 = scmp.ne.s32.totalorder %s44, %s47
    %p53 = scmp.eq.s32.totalorder %s13, 0
    %p54 = por %p52, %p53
    %p55 = scmp.ne.s32.totalorder %s44, %s47
    %p56 = scmp.eq.s32.totalorder %s18, 1
    %p57 = por %p55, %p56
    %p58 = scmp.ne.s32.totalorder %s47, %s48
    %p59 = scmp.eq.s32.totalorder %s18, 0
    %p60 = por %p58, %p59
    %p61 = scmp.ne.s32.totalorder %s47, %s48
    %p62 = scmp.eq.s32.totalorder %s19, 1
    %p63 = por %p61, %p62
    %p65 = scmp.ne.s32.totalorder %s48, %s64
    %p66 = scmp.eq.s32.totalorder %s19, 0
    %p67 = por %p65, %p66
    %s69 = sadd.s32 %s68, 1
    %p72 = scmp.eq.s32.totalorder %s13, 1
    %p73 = scmp.ne.s32.totalorder %s68, %s70
    %p74 = scmp.eq.s32.totalorder %s13, 0
    %p75 = por %p73, %p74
    %p76 = scmp.ne.s32.totalorder %s68, %s70
    %p77 = scmp.eq.s32.totalorder %s18, 1
    %p78 = por %p76, %p77
    %p79 = scmp.ne.s32.totalorder %s70, %s71
    %p80 = scmp.eq.s32.totalorder %s18, 0
    %p81 = por %p79, %p80
    %p82 = scmp.ne.s32.totalorder %s70, %s71
    %p83 = scmp.eq.s32.totalorder %s19, 1
    %p84 = por %p82, %p83
    %p86 = scmp.ne.s32.totalorder %s71, %s85
    %p87 = scmp.eq.s32.totalorder %s19, 0
    %p88 = por %p86, %p87
    %s90 = sadd.s32 %s89, 1
    %p93 = scmp.eq.s32.totalorder %s13, 1
    %p94 = scmp.ne.s32.totalorder %s89, %s91
    %p95 = scmp.eq.s32.totalorder %s13, 0
    %p96 = por %p94, %p95
    %p97 = scmp.ne.s32.totalorder %s89, %s91
    %p98 = scmp.eq.s32.totalorder %s18, 1
    %p99 = por %p97, %p98
    %p100 = scmp.ne.s32.totalorder %s91, %s92
    %p101 = scmp.eq.s32.totalorder %s18, 0
    %p102 = por %p100, %p101
    %p103 = scmp.ne.s32.totalorder %s91, %s92
    %p104 = scmp.eq.s32.totalorder %s19, 1
    %p105 = por %p103, %p104
    %p107 = scmp.ne.s32.totalorder %s92, %s106
    %p108 = scmp.eq.s32.totalorder %s19, 0
    %p109 = por %p107, %p108
    %s111 = sadd.s32 %s110, 1
    %p114 = scmp.eq.s32.totalorder %s13, 1
    %p115 = scmp.ne.s32.totalorder %s110, %s112
    %p116 = scmp.eq.s32.totalorder %s13, 0
    %p117 = por %p115, %p116
    %p118 = scmp.ne.s32.totalorder %s110, %s112
    %p119 = scmp.eq.s32.totalorder %s18, 1
    %p120 = por %p118, %p119
    %p121 = scmp.ne.s32.totalorder %s112, %s113
    %p122 = scmp.eq.s32.totalorder %s18, 0
    %p123 = por %p121, %p122
    %p124 = scmp.ne.s32.totalorder %s112, %s113
    %p125 = scmp.eq.s32.totalorder %s19, 1
    %p126 = por %p124, %p125
    %p128 = scmp.ne.s32.totalorder %s113, %s127
    %p129 = scmp.eq.s32.totalorder %s19, 0
    %p130 = por %p128, %p129
    %s132 = sadd.s32 %s131, 1
    %p135 = scmp.eq.s32.totalorder %s13, 1
    %p136 = scmp.ne.s32.totalorder %s131, %s133
    %p137 = scmp.eq.s32.totalorder %s13, 0
    %p138 = por %p136, %p137
    %p139 = scmp.ne.s32.totalorder %s131, %s133
    %p140 = scmp.eq.s32.totalorder %s18, 1
    %p141 = por %p139, %p140
    %p142 = scmp.ne.s32.totalorder %s133, %s134
    %p143 = scmp.eq.s32.totalorder %s18, 0
    %p144 = por %p142, %p143
    %p145 = scmp.ne.s32.totalorder %s133, %s134
    %p146 = scmp.eq.s32.totalorder %s19, 1
    %p147 = por %p145, %p146
    %p149 = scmp.ne.s32.totalorder %s134, %s148
    %p150 = scmp.eq.s32.totalorder %s19, 0
    %p151 = por %p149, %p150
    %s152 = ssub.s32 %s13, %s20
    %p153 = scmp.eq.s32.totalorder %s152, 0
    %s155 = sadd.s32 %s154, 1
    %s156 = scalar_select %p153, %s154, %s155
    %p159 = pneg %p153
    %p160 = scmp.eq.s32.totalorder %s13, 1
    %p161 = por %p159, %p160
    %p162 = scmp.ne.s32.totalorder %s154, %s157
    %p163 = scmp.eq.s32.totalorder %s13, 0
    %p164 = por %p162, %p163
    %p165 = scmp.ne.s32.totalorder %s154, %s157
    %p166 = scmp.eq.s32.totalorder %s18, 1
    %p167 = por %p165, %p166
    %p168 = scmp.ne.s32.totalorder %s157, %s158
    %p169 = scmp.eq.s32.totalorder %s18, 0
    %p170 = por %p168, %p169
    %p171 = scmp.ne.s32.totalorder %s157, %s158
    %p172 = scmp.eq.s32.totalorder %s19, 1
    %p173 = por %p171, %p172
    %p175 = scmp.ne.s32.totalorder %s158, %s174
    %p176 = scmp.eq.s32.totalorder %s19, 0
    %p177 = por %p175, %p176
    %p178 = scmp.le.s32.totalorder 1, %s13
    %p179 = scmp.lt.s32.totalorder %s13, 3
    %p180 = pnand %p178, %p179
    %p181 = pneg %p180
    // Predicated region
    $region9: #{tpu_custom_call.1} parent=5 // pred_check
      _
    $region10: #{tpu_custom_call.1} parent=5 // pred_check_branch
      %183 = sbr.rel (%p180) target = $region12
    $region11: #{tpu_custom_call.1} parent=5 // pred_region
      %s184 = ssub.s32 %s13, 1
      // Predicated region
      $region13: #{tpu_custom_call.1} parent=11 // pred_check
        %p185 = pneg %p34
      $region14: #{tpu_custom_call.1} parent=11 // pred_check_branch
        %187 = sbr.rel (%p185) target = $region16
      $region15: #{tpu_custom_call.1} parent=11 // pred_region
        _
      $region16: #{tpu_custom_call.1} parent=11 // pred_fallthru
        _
      // Predicated region
      $region17: #{tpu_custom_call.1} parent=11 // pred_check
        %p188 = pneg %p81
      $region18: #{tpu_custom_call.1} parent=11 // pred_check_branch
        %190 = sbr.rel (%p188) target = $region20
      $region19: #{tpu_custom_call.1} parent=11 // pred_region
        _
      $region20: #{tpu_custom_call.1} parent=11 // pred_fallthru
        _
      // Predicated region
      $region21: #{tpu_custom_call.1} parent=11 // pred_check
        %p191 = pneg %p102
      $region22: #{tpu_custom_call.1} parent=11 // pred_check_branch
        %193 = sbr.rel (%p191) target = $region24
      $region23: #{tpu_custom_call.1} parent=11 // pred_region
        _
      $region24: #{tpu_custom_call.1} parent=11 // pred_fallthru
        _
      // Predicated region
      $region25: #{tpu_custom_call.1} parent=11 // pred_check
        %p194 = pneg %p123
      $region26: #{tpu_custom_call.1} parent=11 // pred_check_branch
        %196 = sbr.rel (%p194) target = $region28
      $region27: #{tpu_custom_call.1} parent=11 // pred_region
        _
      $region28: #{tpu_custom_call.1} parent=11 // pred_fallthru
        _
      // Predicated region
      $region29: #{tpu_custom_call.1} parent=11 // pred_check
        %p197 = pneg %p144
      $region30: #{tpu_custom_call.1} parent=11 // pred_check_branch
        %199 = sbr.rel (%p197) target = $region32
      $region31: #{tpu_custom_call.1} parent=11 // pred_region
        _
      $region32: #{tpu_custom_call.1} parent=11 // pred_fallthru
        _
    $region12: #{tpu_custom_call.1} parent=5 // pred_fallthru
      _
    %p200 = scmp.lt.s32.totalorder %s13, 2
    // Predicated region
    $region33: #{tpu_custom_call.1} parent=5 // pred_check
      %p201 = pneg %p200
    $region34: #{tpu_custom_call.1} parent=5 // pred_check_branch
      %203 = sbr.rel (%p201) target = $region36
    $region35: #{tpu_custom_call.1} parent=5 // pred_region
      // Predicated region
      $region37: #{tpu_custom_call.1} parent=35 // pred_check
        %p204 = pneg %p54
      $region38: #{tpu_custom_call.1} parent=35 // pred_check_branch
        %206 = sbr.rel (%p204) target = $region40
      $region39: #{tpu_custom_call.1} parent=35 // pred_region
        %s207 = smul.u32 4, %s13
        %p208 = scmp.lt.s32.totalorder %s207, 7
        %s209 = scalar_select %p208, %s207, 7
        %s210 = smul.addr %s209, 8
        %s211 = scalar_lea.vmem %s1, %s210
        %s212 = smul.u32 4, %s13
      $region40: #{tpu_custom_call.1} parent=35 // pred_fallthru
        _
    $region36: #{tpu_custom_call.1} parent=5 // pred_fallthru
      _
    %p213 = scmp.le.s32.totalorder 1, %s13
    %p214 = scmp.lt.s32.totalorder %s13, 3
    %p215 = pnand %p213, %p214
    %p216 = pneg %p215
    // Predicated region
    $region41: #{tpu_custom_call.1} parent=5 // pred_check
      _
    $region42: #{tpu_custom_call.1} parent=5 // pred_check_branch
      %218 = sbr.rel (%p215) target = $region44
    $region43: #{tpu_custom_call.1} parent=5 // pred_region
      %s219 = ssub.s32 %s13, 1
      %p220 = pneg %p34
      %p221 = pneg %p31
      %s222 = smul.u32 4, %s18
      %p223 = scmp.lt.s32.totalorder %s222, 7
      %s224 = scalar_select %p223, %s222, 7
      %s225 = smul.addr %s224, 8
      %s226 = scalar_lea.vmem %s1, %s225
      %p227 = pneg %p60
      %p228 = pneg %p57
      %p229 = pneg %p81
      %p230 = pneg %p78
      %p231 = pneg %p102
      %p232 = pneg %p99
      %p233 = pneg %p123
      %p234 = pneg %p120
      %p235 = pneg %p144
      %p236 = pneg %p141
      %p237 = pneg %p170
      %p238 = pneg %p167
      %s239 = smul.u32 4, %s18
      %p240 = scmp.lt.s32.totalorder %s239, 7
      %s241 = scalar_select %p240, %s239, 7
      %s242 = smul.addr %s241, 8
      %s243 = scalar_lea.vmem %s6, %s242
      %s244 = smul.u32 4, %s18
      %p245 = scmp.lt.s32.totalorder %s244, 7
      %s246 = scalar_select %p245, %s244, 7
      %s247 = smul.addr %s246, 8
      %s248 = scalar_lea.vmem %s1, %s247
      %s249 = smul.u32 4, %s18
      %s250 = smul.u32 4, %s18
      %p251 = scmp.lt.s32.totalorder %s250, 7
      %s252 = scalar_select %p251, %s250, 7
      %s253 = smul.addr %s252, 8
      %s254 = scalar_lea.vmem %s6, %s253
      %s255 = smul.u32 4, %s18
      %v256 = vld [vmem:[%s248] sm:$0xff]
      %v257 = vld [vmem:[%s248 + $0x8] sm:$0xff]
      %v258 = vld [vmem:[%s248 + $0x10] sm:$0xff]
      %v259 = vld [vmem:[%s248 + $0x18] sm:$0xff]
      %s260 = sld [smem:[#allocation2]]
      %s261 = ssub.f32 0.0, %s260
      %v262 = vld [vmem:[%s2] sm:$0xff]
      %v263 = vld [vmem:[%s2 + $0x8] sm:$0xff]
      %v264 = vld [vmem:[%s4] sm:$0x1]
      %v266 = vlaneseq
      %v267 = vshrl.u32 %v266, 7
      %v268 = vsub.s32 0, %v267
      %v269 = vrot.slane %v264, %v268
      %vm271 = vcmask 130048
      %v273 = vsel %vm271, %v256, 0
      %v276 = vsel %vm271, %v257, 0
      %v279 = vsel %vm271, %v258, 0
      %v282 = vsel %vm271, %v259, 0
      %284 = vmatprep.subr.mxu0 0.0
      %285 = vmatpush1.msra.mxu0 %v262
      %286 = vmatprep.subr.mxu0 0.0
      %287 = vmatpush1.msra.mxu0 %v263
      %288 = vmatprep.subr.mxu0 0.0
      %289 = vmatpush1.msra.mxu0 0.0
      %290 = vmatprep.subr.mxu0 0.0
      %291 = vmatpush1.msra.mxu0 0.0
      %292 = vmatprep.subr.mxu0 0.0
      %293 = vmatpush1.msra.mxu0 0.0
      %294 = vmatprep.subr.mxu0 0.0
      %295 = vmatpush1.msra.mxu0 0.0
      %296 = vmatprep.subr.mxu0 0.0
      %297 = vmatpush1.msra.mxu0 0.0
      %298 = vmatprep.subr.mxu0 0.0
      %299 = vmatpush1.msra.mxu0 0.0
      %300 = vmatprep.subr.mxu0 0.0
      %301 = vmatpush1.msra.mxu0 0.0
      %302 = vmatprep.subr.mxu0 0.0
      %303 = vmatpush1.msra.mxu0 0.0
      %304 = vmatprep.subr.mxu0 0.0
      %305 = vmatpush1.msra.mxu0 0.0
      %306 = vmatprep.subr.mxu0 0.0
      %307 = vmatpush1.msra.mxu0 0.0
      %308 = vmatprep.subr.mxu0 0.0
      %309 = vmatpush1.msra.mxu0 0.0
      %310 = vmatprep.subr.mxu0 0.0
      %311 = vmatpush1.msra.mxu0 0.0
      %312 = vmatprep.subr.mxu0 0.0
      %313 = vmatpush1.msra.mxu0 0.0
      %314 = vmatprep.subr.mxu0 0.0
      %315 = vmatpush1.msra.mxu0 0.0
      %316 = vmatprep.subr.mxu0 0.0
      %317 = vmatpush1.msra.mxu0 0.0
      %318 = vmatprep.subr.mxu0 0.0
      %319 = vmatpush1.msra.mxu0 0.0
      %320 = vmatprep.subr.mxu0 0.0
      %321 = vmatpush1.msra.mxu0 0.0
      %322 = vmatprep.subr.mxu0 0.0
      %323 = vmatpush1.msra.mxu0 0.0
      %324 = vmatprep.subr.mxu0 0.0
      %325 = vmatpush1.msra.mxu0 0.0
      %326 = vmatprep.subr.mxu0 0.0
      %327 = vmatpush1.msra.mxu0 0.0
      %328 = vmatprep.subr.mxu0 0.0
      %329 = vmatpush1.msra.mxu0 0.0
      %330 = vmatprep.subr.mxu0 0.0
      %331 = vmatpush1.msra.mxu0 0.0
      %332 = vmatprep.subr.mxu0 0.0
      %333 = vmatpush1.msra.mxu0 0.0
      %334 = vmatprep.subr.mxu0 0.0
      %335 = vmatpush1.msra.mxu0 0.0
      %336 = vmatprep.subr.mxu0 0.0
      %337 = vmatpush1.msra.mxu0 0.0
      %338 = vmatprep.subr.mxu0 0.0
      %339 = vmatpush1.msra.mxu0 0.0
      %340 = vmatprep.subr.mxu0 0.0
      %341 = vmatpush1.msra.mxu0 0.0
      %342 = vmatprep.subr.mxu0 0.0
      %343 = vmatpush1.msra.mxu0 0.0
      %344 = vmatprep.subr.mxu0 0.0
      %345 = vmatpush1.msra.mxu0 0.0
      %346 = vmatprep.subr.mxu0 0.0
      %347 = vmatpush1.msra.mxu0 0.0
      %348 = vmatprep.mubr.f32.mxu0 0.0
      %349 = vmatmul.mubr.f32.gmra.mrb[0].mxu0 %v273
      %v350 = vpop.f32.mrb[0].mxu0
      %v351 = vadd.f32 %v269, %v350
      %v352 = vpop.f32.mrb[0].mxu0
      %353 = vmatprep.mubr.f32.mxu0 0.0
      %354 = vmatmul.mubr.f32.gmra.mrb[0].mxu0 %v276
      %v355 = vpop.f32.mrb[0].mxu0
      %v356 = vadd.f32 %v269, %v355
      %v357 = vpop.f32.mrb[0].mxu0
      %358 = vmatprep.mubr.f32.mxu0 0.0
      %359 = vmatmul.mubr.f32.gmra.mrb[0].mxu0 %v279
      %v360 = vpop.f32.mrb[0].mxu0
      %v361 = vadd.f32 %v269, %v360
      %v362 = vpop.f32.mrb[0].mxu0
      %363 = vmatprep.mubr.f32.mxu0 0.0
      %364 = vmatmul.mubr.f32.gmra.mrb[0].mxu0 %v282
      %v365 = vpop.f32.mrb[0].mxu0
      %v366 = vadd.f32 %v269, %v365
      %v367 = vpop.f32.mrb[0].mxu0
      %368 = vdwg.mxu0
      %v369 = vtanh.pop %v351
      %v370 = vtanh.pop %v356
      %v371 = vtanh.pop %v361
      %v372 = vtanh.pop %v366
      %v373 = vmul.f32 %v369, %v369
      %v374 = vmul.f32 %v370, %v370
      %v375 = vmul.f32 %v371, %v371
      %v376 = vmul.f32 %v372, %v372
      %v377 = vsub.f32 1.0, %v373
      %v378 = vsub.f32 1.0, %v374
      %v379 = vsub.f32 1.0, %v375
      %v380 = vsub.f32 1.0, %v376
      %v381 = vld [vmem:[%s5] sm:$0x1]
      %v382 = vstv %s261
      %v383 = vmul.f32 %v382, %v381
      %v385 = vlaneseq
      %v386 = vshrl.u32 %v385, 7
      %v387 = vsub.s32 0, %v386
      %v388 = vrot.slane %v383, %v387
      %v390 = vmul.f32 %v377, %v388
      %v391 = vmul.f32 %v378, %v388
      %v392 = vmul.f32 %v379, %v388
      %v393 = vmul.f32 %v380, %v388
      %v394 = vld [vmem:[%s3] sm:$0xff]
      %v395 = vld [vmem:[%s3 + $0x8] sm:$0xff]
      %v396 = vld [vmem:[%s3 + $0x10] sm:$0xff]
      %v397 = vld [vmem:[%s3 + $0x18] sm:$0xff]
      %vm398 = vcmask 261120
      %v400 = vsel %vm398, %v390, 0
      %v403 = vsel %vm398, %v391, 0
      %v406 = vsel %vm398, %v392, 0
      %v409 = vsel %vm398, %v393, 0
      %411 = vmatprep.subr.mxu0 0.0
      %412 = vmatpush1.msra.mxu0 %v394
      %413 = vmatprep.subr.mxu0 0.0
      %414 = vmatpush1.msra.mxu0 %v395
      %415 = vmatprep.subr.mxu0 0.0
      %416 = vmatpush1.msra.mxu0 %v396
      %417 = vmatprep.subr.mxu0 0.0
      %418 = vmatpush1.msra.mxu0 %v397
      %419 = vmatprep.subr.mxu0 0.0
      %420 = vmatpush1.msra.mxu0 0.0
      %421 = vmatprep.subr.mxu0 0.0
      %422 = vmatpush1.msra.mxu0 0.0
      %423 = vmatprep.subr.mxu0 0.0
      %424 = vmatpush1.msra.mxu0 0.0
      %425 = vmatprep.subr.mxu0 0.0
      %426 = vmatpush1.msra.mxu0 0.0
      %427 = vmatprep.subr.mxu0 0.0
      %428 = vmatpush1.msra.mxu0 0.0
      %429 = vmatprep.subr.mxu0 0.0
      %430 = vmatpush1.msra.mxu0 0.0
      %431 = vmatprep.subr.mxu0 0.0
      %432 = vmatpush1.msra.mxu0 0.0
      %433 = vmatprep.subr.mxu0 0.0
      %434 = vmatpush1.msra.mxu0 0.0
      %435 = vmatprep.subr.mxu0 0.0
      %436 = vmatpush1.msra.mxu0 0.0
      %437 = vmatprep.subr.mxu0 0.0
      %438 = vmatpush1.msra.mxu0 0.0
      %439 = vmatprep.subr.mxu0 0.0
      %440 = vmatpush1.msra.mxu0 0.0
      %441 = vmatprep.subr.mxu0 0.0
      %442 = vmatpush1.msra.mxu0 0.0
      %443 = vmatprep.subr.mxu0 0.0
      %444 = vmatpush1.msra.mxu0 0.0
      %445 = vmatprep.subr.mxu0 0.0
      %446 = vmatpush1.msra.mxu0 0.0
      %447 = vmatprep.subr.mxu0 0.0
      %448 = vmatpush1.msra.mxu0 0.0
      %449 = vmatprep.subr.mxu0 0.0
      %450 = vmatpush1.msra.mxu0 0.0
      %451 = vmatprep.subr.mxu0 0.0
      %452 = vmatpush1.msra.mxu0 0.0
      %453 = vmatprep.subr.mxu0 0.0
      %454 = vmatpush1.msra.mxu0 0.0
      %455 = vmatprep.subr.mxu0 0.0
      %456 = vmatpush1.msra.mxu0 0.0
      %457 = vmatprep.subr.mxu0 0.0
      %458 = vmatpush1.msra.mxu0 0.0
      %459 = vmatprep.subr.mxu0 0.0
      %460 = vmatpush1.msra.mxu0 0.0
      %461 = vmatprep.subr.mxu0 0.0
      %462 = vmatpush1.msra.mxu0 0.0
      %463 = vmatprep.subr.mxu0 0.0
      %464 = vmatpush1.msra.mxu0 0.0
      %465 = vmatprep.subr.mxu0 0.0
      %466 = vmatpush1.msra.mxu0 0.0
      %467 = vmatprep.subr.mxu0 0.0
      %468 = vmatpush1.msra.mxu0 0.0
      %469 = vmatprep.subr.mxu0 0.0
      %470 = vmatpush1.msra.mxu0 0.0
      %471 = vmatprep.subr.mxu0 0.0
      %472 = vmatpush1.msra.mxu0 0.0
      %473 = vmatprep.subr.mxu0 0.0
      %474 = vmatpush1.msra.mxu0 0.0
      %475 = vmatprep.mubr.f32.mxu0 0.0
      %476 = vmatmul.mubr.f32.gmra.mrb[0].mxu0 %v400
      %v477 = vpop.f32.mrb[0].mxu0
      %v478 = vadd.f32 0.0, %v477
      %v479 = vpop.f32.mrb[0].mxu0
      %480 = vmatprep.mubr.f32.mxu0 0.0
      %481 = vmatmul.mubr.f32.gmra.mrb[0].mxu0 %v403
      %v482 = vpop.f32.mrb[0].mxu0
      %v483 = vadd.f32 0.0, %v482
      %v484 = vpop.f32.mrb[0].mxu0
      %485 = vmatprep.mubr.f32.mxu0 0.0
      %486 = vmatmul.mubr.f32.gmra.mrb[0].mxu0 %v406
      %v487 = vpop.f32.mrb[0].mxu0
      %v488 = vadd.f32 0.0, %v487
      %v489 = vpop.f32.mrb[0].mxu0
      %490 = vmatprep.mubr.f32.mxu0 0.0
      %491 = vmatmul.mubr.f32.gmra.mrb[0].mxu0 %v409
      %v492 = vpop.f32.mrb[0].mxu0
      %v493 = vadd.f32 0.0, %v492
      %v494 = vpop.f32.mrb[0].mxu0
      %495 = vdwg.mxu0
      %496 = vst.msk [vmem:[%s254] sm:$0xff] %vm271, %v478
      %497 = vst.msk [vmem:[%s254 + $0x8] sm:$0xff] %vm271, %v483
      %498 = vst.msk [vmem:[%s254 + $0x10] sm:$0xff] %vm271, %v488
      %499 = vst.msk [vmem:[%s254 + $0x18] sm:$0xff] %vm271, %v493
      %s500 = smul.u32 4, %s18
      %p501 = scmp.lt.s32.totalorder %s500, 7
      %s502 = scalar_select %p501, %s500, 7
      %s503 = smul.addr %s502, 8
      %s504 = scalar_lea.vmem %s6, %s503
      // Predicated region
      $region45: #{tpu_custom_call.1} parent=43 // pred_check
        %p505 = pneg %p167
      $region46: #{tpu_custom_call.1} parent=43 // pred_check_branch
        %507 = sbr.rel (%p505) target = $region48
      $region47: #{tpu_custom_call.1} parent=43 // pred_region
        %s508 = smul.u32 4, %s18
      $region48: #{tpu_custom_call.1} parent=43 // pred_fallthru
        _
    $region44: #{tpu_custom_call.1} parent=5 // pred_fallthru
      _
    %p509 = scmp.le.s32.totalorder 2, %s13
    // Predicated region
    $region49: #{tpu_custom_call.1} parent=5 // pred_check
      %p510 = pneg %p509
    $region50: #{tpu_custom_call.1} parent=5 // pred_check_branch
      %512 = sbr.rel (%p510) target = $region52
    $region51: #{tpu_custom_call.1} parent=5 // pred_region
      %s513 = ssub.s32 %s13, 2
      // Predicated region
      $region53: #{tpu_custom_call.1} parent=51 // pred_check
        %p514 = pneg %p173
      $region54: #{tpu_custom_call.1} parent=51 // pred_check_branch
        %516 = sbr.rel (%p514) target = $region56
      $region55: #{tpu_custom_call.1} parent=51 // pred_region
        %s517 = smul.u32 4, %s19
        %p518 = scmp.lt.s32.totalorder %s517, 7
        %s519 = scalar_select %p518, %s517, 7
        %s520 = smul.addr %s519, 8
        %s521 = scalar_lea.vmem %s6, %s520
      $region56: #{tpu_custom_call.1} parent=51 // pred_fallthru
        _
    $region52: #{tpu_custom_call.1} parent=5 // pred_fallthru
      _
  $region6: #{tpu_custom_call.1} parent=0 // loop_footer
    %s17 = sadd.s32 1, %s13
  $region7: #{tpu_custom_call.1} parent=0 // loop_footer_branch
    %12 = sbr.rel target = $region3
  $region8: #{tpu_custom_call.1} parent=0 // loop_exit
    _

</llo_original>
